<compile_context>
chip_gen: v7x
topology: tpu7x:2x2x1
jax: 0.10.0
libtpu: 0.0.40
codegen_flags: <defaults>
</compile_context>

<pallas_src>
import jax
import jax.numpy as jnp
from jax.experimental import pallas as pl
from jax.experimental.pallas import tpu as pltpu


def _parity_kernel(scal_ref, x_ref, w1_ref, b1_ref, w2t_ref, out_ref):
    """Whole forward pass in one invocation.

    scal_ref (SMEM, f32[12]) : [wi0, wi1, w000, w001, w010, w011, w100, w101, w110, w111, b2_0, b2_1]
                               (raw weight_initial / weights / b2 tables, no pre-chewing)
    x_ref   (VMEM, bf16[L*B, D]) : all L flattened binary image batches, stacked row-major
    w1_ref  (VMEM, f32[D, Hd])   : digit-NN layer-1 weight
    b1_ref  (VMEM, f32[1, Hd])   : digit-NN layer-1 bias
    w2t_ref (VMEM, f32[2, Hd])   : digit-NN layer-2 weight, transposed (class rows, lane-major)
    out_ref (VMEM, f32[B, 2])    : col 0 = running min of truth values, col 1 = previous_symbol
    """
    LB, _ = x_ref.shape
    B = out_ref.shape[0]
    L = LB // B

    # ---- 2-class softmax / argmax tables, computed in-kernel from the raw params ----
    # For two logits (l0, l1): max(softmax) == sigmoid(|l1 - l0|); argmax == (l1 > l0)
    # (tie -> index 0, same as the torch/jnp argmax convention).
    def bload(k):  # SMEM scalar -> (B,1) vreg broadcast (hoisted once, reused below)
        return jnp.full((B, 1), scal_ref[k], jnp.float32)

    def max_prob(v):  # exact sigmoid(|v|) -- no approx reciprocal (near-tie safety)
        return 1.0 / (1.0 + jnp.exp(-jnp.abs(v)))

    def arg_sym(v):  # argmax as exact f32 0/1
        return jnp.where(v > 0.0, 1.0, 0.0)

    di_v = bload(1) - bload(0)        # weight_initial logit diff
    d00_v = bload(3) - bload(2)       # weights[0,0,:] logit diff
    d01_v = bload(5) - bload(4)       # weights[0,1,:]
    d10_v = bload(7) - bload(6)       # weights[1,0,:]
    d11_v = bload(9) - bload(8)       # weights[1,1,:]
    b2_diff = (jnp.full((1, 1), scal_ref[11], jnp.float32)
               - jnp.full((1, 1), scal_ref[10], jnp.float32))     # b2[1] - b2[0]

    run_min = max_prob(di_v)          # first_truth_value            (B,1)
    prev = arg_sym(di_v)              # initial previous_symbol      (B,1) f32 0/1

    # hoisted (B,1) rule tables (JAX does not CSE broadcast_in_dim inside the loop)
    t00_v, t01_v = max_prob(d00_v), max_prob(d01_v)
    t10_v, t11_v = max_prob(d10_v), max_prob(d11_v)
    m00_v, m01_v = arg_sym(d00_v), arg_sym(d01_v)
    m10_v, m11_v = arg_sym(d10_v), arg_sym(d11_v)

    # ---- digit NN: ONE MXU pass over all L*B rows: Linear -> ReLU ----
    x = x_ref[...].astype(jnp.float32)   # bf16 pixels are exactly 0/1 -> lossless upcast
    h = jnp.dot(x, w1_ref[...], preferred_element_type=jnp.float32) + b1_ref[...]
    h = jnp.maximum(h, 0.0)

    # 2-class head as a logit-difference matvec on the VPU + XLU lane reduction
    # (replaces the lane-sparse N=1 MXU matmul).
    w2_diff = w2t_ref[1:2, :] - w2t_ref[0:1, :]                       # (1, Hd)
    d = jnp.sum(h * w2_diff, axis=-1, keepdims=True) + b2_diff        # (L*B, 1)

    digit_sym_all = jnp.where(d > 0.0, 1.0, 0.0)                      # argmax(softmax(logits))
    digit_truth_all = 1.0 / (1.0 + jnp.exp(-jnp.abs(d)))              # max(softmax(logits)), exact

    # ---- rule automaton, fully unrolled (L is a trace-time constant); carries in vregs ----
    # TODO(synk): the (B,1) column slices below assume B is a multiple of the 8-sublane
    # tile (true here, B=8); for arbitrary B switch to an (L, B) lane-major layout.
    for l in range(L):
        ds = digit_sym_all[l * B:(l + 1) * B, :]          # (B,1)
        dt = digit_truth_all[l * B:(l + 1) * B, :]        # (B,1)

        # previous_symbol = matrix[digit, prev]
        new_prev = jnp.where(ds == 0.0,
                             jnp.where(prev == 0.0, m00_v, m01_v),
                             jnp.where(prev == 0.0, m10_v, m11_v))
        # rule truth value: truths[digit, new_prev]
        rule_truth = jnp.where(ds == 0.0,
                               jnp.where(new_prev == 0.0, t00_v, t01_v),
                               jnp.where(new_prev == 0.0, t10_v, t11_v))

        run_min = jnp.minimum(run_min, jnp.minimum(rule_truth, dt))
        prev = new_prev

    # single packed output tile: one write-back DMA for both results
    out_ref[:, 0:1] = run_min
    out_ref[:, 1:2] = prev


@jax.jit
def visual_parity_forward(images, weight_initial, weights, w1, b1, w2, b2):
    """images: (L, B, C, H, W) float32 binary images (the torch binary_list, stacked)."""
    L, B = images.shape[0], images.shape[1]
    D = images.shape[2] * images.shape[3] * images.shape[4]
    Hd = w1.shape[1]

    # bf16 is exact for 0/1 pixels: halves the x slab's HBM->VMEM payload.
    x = images.reshape(L * B, D).astype(jnp.bfloat16)

    # Raw parameter tables packed with a SINGLE concatenate; all softmax/argmax/diff
    # math now happens inside the kernel on SMEM scalars.
    scal = jnp.concatenate([
        weight_initial.reshape(-1).astype(jnp.float32),   # [0:2]
        weights.reshape(-1).astype(jnp.float32),          # [2:10]
        b2.reshape(-1).astype(jnp.float32),               # [10:12]
    ])

    w1f = w1.astype(jnp.float32)
    b1v = b1.reshape(1, Hd).astype(jnp.float32)
    w2t = w2.T.astype(jnp.float32)                        # (2, Hd): class-logit rows, lane-major

    # advisory cost hint for XLA's scheduler around the custom call
    cost = pl.CostEstimate(
        flops=2 * L * B * D * Hd + 3 * L * B * Hd,
        transcendentals=L * B + 5 * B,
        bytes_accessed=(L * B * D) * 2 + (D * Hd + Hd + 2 * Hd + 12 + 2 * B) * 4,
    )

    out = pl.pallas_call(
        _parity_kernel,
        out_shape=jax.ShapeDtypeStruct((B, 2), jnp.float32),
        in_specs=[
            pl.BlockSpec(memory_space=pltpu.MemorySpace.SMEM),   # packed scalar params (12,)
            pl.BlockSpec(memory_space=pltpu.MemorySpace.VMEM),   # x (L*B, D) bf16
            pl.BlockSpec(memory_space=pltpu.MemorySpace.VMEM),   # w1 (D, Hd)
            pl.BlockSpec(memory_space=pltpu.MemorySpace.VMEM),   # b1 (1, Hd)
            pl.BlockSpec(memory_space=pltpu.MemorySpace.VMEM),   # w2.T (2, Hd)
        ],
        out_specs=pl.BlockSpec(memory_space=pltpu.MemorySpace.VMEM),
        cost_estimate=cost,
    )(scal, x, w1f, b1v, w2t)

    # match torch shapes: predictions (B,), previous_symbol (B,1,1) int
    preds = out[:, 0]
    prev_sym = out[:, 1].astype(jnp.int32).reshape(B, 1, 1)
    return preds, prev_sym


def reference_forward(images, weight_initial, weights, w1, b1, w2, b2):
    """Pure-JAX transcription of the torch eval=True path, for validation."""
    L, B = images.shape[0], images.shape[1]
    x = images.reshape(L, B, -1).astype(jnp.float32)
    p_init = jnp.tile(jax.nn.softmax(weight_initial, axis=1), (B, 1))   # (B,2)
    first_truth = jnp.max(p_init, axis=-1)                              # (B,)
    prev = jnp.argmax(p_init, axis=-1).astype(jnp.int32)                # (B,)
    sw = jax.nn.softmax(weights, axis=-1)
    truths = jnp.max(sw, axis=-1)
    matrix = jnp.argmax(sw, axis=-1).astype(jnp.int32)
    tv = [first_truth]
    hi = jax.lax.Precision.HIGHEST
    for l in range(L):
        h = jnp.maximum(jnp.dot(x[l], w1, precision=hi) + b1, 0.0)
        probs = jax.nn.softmax(jnp.dot(h, w2, precision=hi) + b2, axis=-1)
        dt = jnp.max(probs, axis=-1)
        ds = jnp.argmax(probs, axis=-1).astype(jnp.int32)
        prev = matrix[ds, prev]
        tv.append(truths[ds, prev])
        tv.append(dt)
    stv = jnp.stack(tv, axis=1)
    return jnp.min(stv, axis=1), prev.reshape(B, 1, 1)


if __name__ == "__main__":
    key = jax.random.PRNGKey(0)
    ks = jax.random.split(key, 7)

    L, B, C, H, W = 4, 8, 1, 16, 16       # sequence length, batch, NCHW image
    D, Hd = C * H * W, 32

    # module parameters (torch.randn in __init__), deterministic in-script
    weight_initial = jax.random.normal(ks[0], (1, 2), jnp.float32)
    weights = jax.random.normal(ks[1], (2, 2, 2), jnp.float32)
    # injected digit-classifier (self.nn) parameters: Linear -> ReLU -> Linear -> softmax
    w1 = jax.random.normal(ks[2], (D, Hd), jnp.float32) * 0.1
    b1 = jax.random.normal(ks[3], (Hd,), jnp.float32) * 0.1
    w2 = jax.random.normal(ks[4], (Hd, 2), jnp.float32) * 0.1
    b2 = jax.random.normal(ks[5], (2,), jnp.float32) * 0.1

    # binary_list: L binary images of shape (B, C, H, W)
    images = (jax.random.uniform(ks[6], (L, B, C, H, W)) > 0.5).astype(jnp.float32)

    preds, prev_sym = visual_parity_forward(
        images, weight_initial, weights, w1, b1, w2, b2)
    jax.block_until_ready((preds, prev_sym))

    ref_preds, ref_prev = reference_forward(
        images, weight_initial, weights, w1, b1, w2, b2)

    assert preds.shape == (B,) and prev_sym.shape == (B, 1, 1)
    # exact sigmoid + f32 matmul path: only residual diff is MXU reduction order
    assert jnp.allclose(preds, ref_preds, atol=1e-4, rtol=1e-4)
    assert jnp.array_equal(prev_sym, ref_prev)

    print("KERNEL_OK")
</pallas_src>

<mosaic_0001>
module attributes {stable_mosaic.version = 11 : i64} {
  func.func @_parity_kernel(%arg0: memref<12xf32, #tpu.memory_space<smem>>, %arg1: memref<32x256xbf16, #tpu.memory_space<vmem>>, %arg2: memref<256x32xf32, #tpu.memory_space<vmem>>, %arg3: memref<1x32xf32, #tpu.memory_space<vmem>>, %arg4: memref<2x32xf32, #tpu.memory_space<vmem>>, %arg5: memref<8x2xf32, #tpu.memory_space<vmem>>) attributes {dimension_semantics = [], scalar_prefetch = 0 : i64, scratch_operands = 0 : i64, tpu.core_type = #tpu.core_type<tc>} {
    %c1 = arith.constant 1 : index
    %0 = memref.load %arg0[%c1] : memref<12xf32, #tpu.memory_space<smem>>
    %1 = vector.broadcast %0 : f32 to vector<8x1xf32>
    %c0 = arith.constant 0 : index
    %2 = memref.load %arg0[%c0] : memref<12xf32, #tpu.memory_space<smem>>
    %3 = vector.broadcast %2 : f32 to vector<8x1xf32>
    %4 = arith.subf %1, %3 : vector<8x1xf32>
    %c3 = arith.constant 3 : index
    %5 = memref.load %arg0[%c3] : memref<12xf32, #tpu.memory_space<smem>>
    %6 = vector.broadcast %5 : f32 to vector<8x1xf32>
    %c2 = arith.constant 2 : index
    %7 = memref.load %arg0[%c2] : memref<12xf32, #tpu.memory_space<smem>>
    %8 = vector.broadcast %7 : f32 to vector<8x1xf32>
    %9 = arith.subf %6, %8 : vector<8x1xf32>
    %c5 = arith.constant 5 : index
    %10 = memref.load %arg0[%c5] : memref<12xf32, #tpu.memory_space<smem>>
    %11 = vector.broadcast %10 : f32 to vector<8x1xf32>
    %c4 = arith.constant 4 : index
    %12 = memref.load %arg0[%c4] : memref<12xf32, #tpu.memory_space<smem>>
    %13 = vector.broadcast %12 : f32 to vector<8x1xf32>
    %14 = arith.subf %11, %13 : vector<8x1xf32>
    %c7 = arith.constant 7 : index
    %15 = memref.load %arg0[%c7] : memref<12xf32, #tpu.memory_space<smem>>
    %16 = vector.broadcast %15 : f32 to vector<8x1xf32>
    %c6 = arith.constant 6 : index
    %17 = memref.load %arg0[%c6] : memref<12xf32, #tpu.memory_space<smem>>
    %18 = vector.broadcast %17 : f32 to vector<8x1xf32>
    %19 = arith.subf %16, %18 : vector<8x1xf32>
    %c9 = arith.constant 9 : index
    %20 = memref.load %arg0[%c9] : memref<12xf32, #tpu.memory_space<smem>>
    %21 = vector.broadcast %20 : f32 to vector<8x1xf32>
    %c8 = arith.constant 8 : index
    %22 = memref.load %arg0[%c8] : memref<12xf32, #tpu.memory_space<smem>>
    %23 = vector.broadcast %22 : f32 to vector<8x1xf32>
    %24 = arith.subf %21, %23 : vector<8x1xf32>
    %c11 = arith.constant 11 : index
    %25 = memref.load %arg0[%c11] : memref<12xf32, #tpu.memory_space<smem>>
    %26 = vector.broadcast %25 : f32 to vector<1x1xf32>
    %c10 = arith.constant 10 : index
    %27 = memref.load %arg0[%c10] : memref<12xf32, #tpu.memory_space<smem>>
    %28 = vector.broadcast %27 : f32 to vector<1x1xf32>
    %29 = arith.subf %26, %28 : vector<1x1xf32>
    %30 = math.absf %4 : vector<8x1xf32>
    %cst = arith.constant 0.000000e+00 : f32
    %31 = vector.broadcast %cst : f32 to vector<8x1xf32>
    %32 = arith.subf %31, %30 : vector<8x1xf32>
    %33 = math.exp %32 : vector<8x1xf32>
    %cst_0 = arith.constant 1.000000e+00 : f32
    %34 = vector.broadcast %cst_0 : f32 to vector<8x1xf32>
    %35 = arith.addf %34, %33 : vector<8x1xf32>
    %cst_1 = arith.constant 1.000000e+00 : f32
    %36 = vector.broadcast %cst_1 : f32 to vector<8x1xf32>
    %37 = arith.divf %36, %35 : vector<8x1xf32>
    %cst_2 = arith.constant 0.000000e+00 : f32
    %38 = vector.broadcast %cst_2 : f32 to vector<8x1xf32>
    %39 = arith.cmpf ogt, %4, %38 : vector<8x1xf32>
    %cst_3 = arith.constant 1.000000e+00 : f32
    %cst_4 = arith.constant 0.000000e+00 : f32
    %40 = vector.broadcast %cst_3 : f32 to vector<8x1xf32>
    %41 = vector.broadcast %cst_4 : f32 to vector<8x1xf32>
    %42 = arith.select %39, %40, %41 : vector<8x1xi1>, vector<8x1xf32>
    %43 = math.absf %9 : vector<8x1xf32>
    %cst_5 = arith.constant 0.000000e+00 : f32
    %44 = vector.broadcast %cst_5 : f32 to vector<8x1xf32>
    %45 = arith.subf %44, %43 : vector<8x1xf32>
    %46 = math.exp %45 : vector<8x1xf32>
    %cst_6 = arith.constant 1.000000e+00 : f32
    %47 = vector.broadcast %cst_6 : f32 to vector<8x1xf32>
    %48 = arith.addf %47, %46 : vector<8x1xf32>
    %cst_7 = arith.constant 1.000000e+00 : f32
    %49 = vector.broadcast %cst_7 : f32 to vector<8x1xf32>
    %50 = arith.divf %49, %48 : vector<8x1xf32>
    %51 = math.absf %14 : vector<8x1xf32>
    %cst_8 = arith.constant 0.000000e+00 : f32
    %52 = vector.broadcast %cst_8 : f32 to vector<8x1xf32>
    %53 = arith.subf %52, %51 : vector<8x1xf32>
    %54 = math.exp %53 : vector<8x1xf32>
    %cst_9 = arith.constant 1.000000e+00 : f32
    %55 = vector.broadcast %cst_9 : f32 to vector<8x1xf32>
    %56 = arith.addf %55, %54 : vector<8x1xf32>
    %cst_10 = arith.constant 1.000000e+00 : f32
    %57 = vector.broadcast %cst_10 : f32 to vector<8x1xf32>
    %58 = arith.divf %57, %56 : vector<8x1xf32>
    %59 = math.absf %19 : vector<8x1xf32>
    %cst_11 = arith.constant 0.000000e+00 : f32
    %60 = vector.broadcast %cst_11 : f32 to vector<8x1xf32>
    %61 = arith.subf %60, %59 : vector<8x1xf32>
    %62 = math.exp %61 : vector<8x1xf32>
    %cst_12 = arith.constant 1.000000e+00 : f32
    %63 = vector.broadcast %cst_12 : f32 to vector<8x1xf32>
    %64 = arith.addf %63, %62 : vector<8x1xf32>
    %cst_13 = arith.constant 1.000000e+00 : f32
    %65 = vector.broadcast %cst_13 : f32 to vector<8x1xf32>
    %66 = arith.divf %65, %64 : vector<8x1xf32>
    %67 = math.absf %24 : vector<8x1xf32>
    %cst_14 = arith.constant 0.000000e+00 : f32
    %68 = vector.broadcast %cst_14 : f32 to vector<8x1xf32>
    %69 = arith.subf %68, %67 : vector<8x1xf32>
    %70 = math.exp %69 : vector<8x1xf32>
    %cst_15 = arith.constant 1.000000e+00 : f32
    %71 = vector.broadcast %cst_15 : f32 to vector<8x1xf32>
    %72 = arith.addf %71, %70 : vector<8x1xf32>
    %cst_16 = arith.constant 1.000000e+00 : f32
    %73 = vector.broadcast %cst_16 : f32 to vector<8x1xf32>
    %74 = arith.divf %73, %72 : vector<8x1xf32>
    %cst_17 = arith.constant 0.000000e+00 : f32
    %75 = vector.broadcast %cst_17 : f32 to vector<8x1xf32>
    %76 = arith.cmpf ogt, %9, %75 : vector<8x1xf32>
    %cst_18 = arith.constant 1.000000e+00 : f32
    %cst_19 = arith.constant 0.000000e+00 : f32
    %77 = vector.broadcast %cst_18 : f32 to vector<8x1xf32>
    %78 = vector.broadcast %cst_19 : f32 to vector<8x1xf32>
    %79 = arith.select %76, %77, %78 : vector<8x1xi1>, vector<8x1xf32>
    %cst_20 = arith.constant 0.000000e+00 : f32
    %80 = vector.broadcast %cst_20 : f32 to vector<8x1xf32>
    %81 = arith.cmpf ogt, %14, %80 : vector<8x1xf32>
    %cst_21 = arith.constant 1.000000e+00 : f32
    %cst_22 = arith.constant 0.000000e+00 : f32
    %82 = vector.broadcast %cst_21 : f32 to vector<8x1xf32>
    %83 = vector.broadcast %cst_22 : f32 to vector<8x1xf32>
    %84 = arith.select %81, %82, %83 : vector<8x1xi1>, vector<8x1xf32>
    %cst_23 = arith.constant 0.000000e+00 : f32
    %85 = vector.broadcast %cst_23 : f32 to vector<8x1xf32>
    %86 = arith.cmpf ogt, %19, %85 : vector<8x1xf32>
    %cst_24 = arith.constant 1.000000e+00 : f32
    %cst_25 = arith.constant 0.000000e+00 : f32
    %87 = vector.broadcast %cst_24 : f32 to vector<8x1xf32>
    %88 = vector.broadcast %cst_25 : f32 to vector<8x1xf32>
    %89 = arith.select %86, %87, %88 : vector<8x1xi1>, vector<8x1xf32>
    %cst_26 = arith.constant 0.000000e+00 : f32
    %90 = vector.broadcast %cst_26 : f32 to vector<8x1xf32>
    %91 = arith.cmpf ogt, %24, %90 : vector<8x1xf32>
    %cst_27 = arith.constant 1.000000e+00 : f32
    %cst_28 = arith.constant 0.000000e+00 : f32
    %92 = vector.broadcast %cst_27 : f32 to vector<8x1xf32>
    %93 = vector.broadcast %cst_28 : f32 to vector<8x1xf32>
    %94 = arith.select %91, %92, %93 : vector<8x1xi1>, vector<8x1xf32>
    %c0_29 = arith.constant 0 : index
    %c0_30 = arith.constant 0 : index
    %95 = vector.load %arg1[%c0_29, %c0_30] : memref<32x256xbf16, #tpu.memory_space<vmem>>, vector<32x256xbf16>
    %96 = arith.extf %95 : vector<32x256xbf16> to vector<32x256xf32>
    %c0_31 = arith.constant 0 : index
    %c0_32 = arith.constant 0 : index
    %97 = vector.load %arg2[%c0_31, %c0_32] : memref<256x32xf32, #tpu.memory_space<vmem>>, vector<256x32xf32>
    %cst_33 = arith.constant dense<0.000000e+00> : vector<32x32xf32>
    %98 = tpu.matmul %96, %97, %cst_33 {dimension_numbers = #tpu.dot_dimension_numbers<[1], [0], [0], [1], [0, 0, 1, 1], [], []>} : vector<32x256xf32>, vector<256x32xf32>, vector<32x32xf32> -> vector<32x32xf32>
    %c0_34 = arith.constant 0 : index
    %c0_35 = arith.constant 0 : index
    %99 = vector.load %arg3[%c0_34, %c0_35] : memref<1x32xf32, #tpu.memory_space<vmem>>, vector<1x32xf32>
    %100 = vector.broadcast %99 : vector<1x32xf32> to vector<32x32xf32>
    %101 = arith.addf %98, %100 : vector<32x32xf32>
    %cst_36 = arith.constant 0.000000e+00 : f32
    %102 = vector.broadcast %cst_36 : f32 to vector<32x32xf32>
    %103 = arith.maximumf %101, %102 : vector<32x32xf32>
    %c1_37 = arith.constant 1 : index
    %c0_38 = arith.constant 0 : index
    %104 = vector.load %arg4[%c1_37, %c0_38] : memref<2x32xf32, #tpu.memory_space<vmem>>, vector<1x32xf32>
    %c0_39 = arith.constant 0 : index
    %c0_40 = arith.constant 0 : index
    %105 = vector.load %arg4[%c0_39, %c0_40] : memref<2x32xf32, #tpu.memory_space<vmem>>, vector<1x32xf32>
    %106 = arith.subf %104, %105 : vector<1x32xf32>
    %107 = vector.broadcast %106 : vector<1x32xf32> to vector<32x32xf32>
    %108 = arith.mulf %103, %107 : vector<32x32xf32>
    %cst_41 = arith.constant dense<0.000000e+00> : vector<32xf32>
    %109 = vector.multi_reduction <add>, %108, %cst_41 [1] : vector<32x32xf32> to vector<32xf32>
    %110 = vector.shape_cast %109 : vector<32xf32> to vector<32x1xf32>
    %111 = vector.broadcast %29 : vector<1x1xf32> to vector<32x1xf32>
    %112 = arith.addf %110, %111 : vector<32x1xf32>
    %cst_42 = arith.constant 0.000000e+00 : f32
    %113 = vector.broadcast %cst_42 : f32 to vector<32x1xf32>
    %114 = arith.cmpf ogt, %112, %113 : vector<32x1xf32>
    %cst_43 = arith.constant 1.000000e+00 : f32
    %cst_44 = arith.constant 0.000000e+00 : f32
    %115 = vector.broadcast %cst_43 : f32 to vector<32x1xf32>
    %116 = vector.broadcast %cst_44 : f32 to vector<32x1xf32>
    %117 = arith.select %114, %115, %116 : vector<32x1xi1>, vector<32x1xf32>
    %118 = math.absf %112 : vector<32x1xf32>
    %cst_45 = arith.constant 0.000000e+00 : f32
    %119 = vector.broadcast %cst_45 : f32 to vector<32x1xf32>
    %120 = arith.subf %119, %118 : vector<32x1xf32>
    %121 = math.exp %120 : vector<32x1xf32>
    %cst_46 = arith.constant 1.000000e+00 : f32
    %122 = vector.broadcast %cst_46 : f32 to vector<32x1xf32>
    %123 = arith.addf %122, %121 : vector<32x1xf32>
    %cst_47 = arith.constant 1.000000e+00 : f32
    %124 = vector.broadcast %cst_47 : f32 to vector<32x1xf32>
    %125 = arith.divf %124, %123 : vector<32x1xf32>
    %126 = vector.extract_strided_slice %117 {offsets = [0, 0], sizes = [8, 1], strides = [1, 1]} : vector<32x1xf32> to vector<8x1xf32>
    %127 = vector.extract_strided_slice %125 {offsets = [0, 0], sizes = [8, 1], strides = [1, 1]} : vector<32x1xf32> to vector<8x1xf32>
    %cst_48 = arith.constant 0.000000e+00 : f32
    %128 = vector.broadcast %cst_48 : f32 to vector<8x1xf32>
    %129 = arith.cmpf oeq, %126, %128 : vector<8x1xf32>
    %cst_49 = arith.constant 0.000000e+00 : f32
    %130 = vector.broadcast %cst_49 : f32 to vector<8x1xf32>
    %131 = arith.cmpf oeq, %42, %130 : vector<8x1xf32>
    %132 = arith.select %131, %79, %84 : vector<8x1xi1>, vector<8x1xf32>
    %cst_50 = arith.constant 0.000000e+00 : f32
    %133 = vector.broadcast %cst_50 : f32 to vector<8x1xf32>
    %134 = arith.cmpf oeq, %42, %133 : vector<8x1xf32>
    %135 = arith.select %134, %89, %94 : vector<8x1xi1>, vector<8x1xf32>
    %136 = arith.select %129, %132, %135 : vector<8x1xi1>, vector<8x1xf32>
    %cst_51 = arith.constant 0.000000e+00 : f32
    %137 = vector.broadcast %cst_51 : f32 to vector<8x1xf32>
    %138 = arith.cmpf oeq, %126, %137 : vector<8x1xf32>
    %cst_52 = arith.constant 0.000000e+00 : f32
    %139 = vector.broadcast %cst_52 : f32 to vector<8x1xf32>
    %140 = arith.cmpf oeq, %136, %139 : vector<8x1xf32>
    %141 = arith.select %140, %50, %58 : vector<8x1xi1>, vector<8x1xf32>
    %cst_53 = arith.constant 0.000000e+00 : f32
    %142 = vector.broadcast %cst_53 : f32 to vector<8x1xf32>
    %143 = arith.cmpf oeq, %136, %142 : vector<8x1xf32>
    %144 = arith.select %143, %66, %74 : vector<8x1xi1>, vector<8x1xf32>
    %145 = arith.select %138, %141, %144 : vector<8x1xi1>, vector<8x1xf32>
    %146 = arith.minimumf %145, %127 : vector<8x1xf32>
    %147 = arith.minimumf %37, %146 : vector<8x1xf32>
    %148 = vector.extract_strided_slice %117 {offsets = [8, 0], sizes = [8, 1], strides = [1, 1]} : vector<32x1xf32> to vector<8x1xf32>
    %149 = vector.extract_strided_slice %125 {offsets = [8, 0], sizes = [8, 1], strides = [1, 1]} : vector<32x1xf32> to vector<8x1xf32>
    %cst_54 = arith.constant 0.000000e+00 : f32
    %150 = vector.broadcast %cst_54 : f32 to vector<8x1xf32>
    %151 = arith.cmpf oeq, %148, %150 : vector<8x1xf32>
    %cst_55 = arith.constant 0.000000e+00 : f32
    %152 = vector.broadcast %cst_55 : f32 to vector<8x1xf32>
    %153 = arith.cmpf oeq, %136, %152 : vector<8x1xf32>
    %154 = arith.select %153, %79, %84 : vector<8x1xi1>, vector<8x1xf32>
    %cst_56 = arith.constant 0.000000e+00 : f32
    %155 = vector.broadcast %cst_56 : f32 to vector<8x1xf32>
    %156 = arith.cmpf oeq, %136, %155 : vector<8x1xf32>
    %157 = arith.select %156, %89, %94 : vector<8x1xi1>, vector<8x1xf32>
    %158 = arith.select %151, %154, %157 : vector<8x1xi1>, vector<8x1xf32>
    %cst_57 = arith.constant 0.000000e+00 : f32
    %159 = vector.broadcast %cst_57 : f32 to vector<8x1xf32>
    %160 = arith.cmpf oeq, %148, %159 : vector<8x1xf32>
    %cst_58 = arith.constant 0.000000e+00 : f32
    %161 = vector.broadcast %cst_58 : f32 to vector<8x1xf32>
    %162 = arith.cmpf oeq, %158, %161 : vector<8x1xf32>
    %163 = arith.select %162, %50, %58 : vector<8x1xi1>, vector<8x1xf32>
    %cst_59 = arith.constant 0.000000e+00 : f32
    %164 = vector.broadcast %cst_59 : f32 to vector<8x1xf32>
    %165 = arith.cmpf oeq, %158, %164 : vector<8x1xf32>
    %166 = arith.select %165, %66, %74 : vector<8x1xi1>, vector<8x1xf32>
    %167 = arith.select %160, %163, %166 : vector<8x1xi1>, vector<8x1xf32>
    %168 = arith.minimumf %167, %149 : vector<8x1xf32>
    %169 = arith.minimumf %147, %168 : vector<8x1xf32>
    %170 = vector.extract_strided_slice %117 {offsets = [16, 0], sizes = [8, 1], strides = [1, 1]} : vector<32x1xf32> to vector<8x1xf32>
    %171 = vector.extract_strided_slice %125 {offsets = [16, 0], sizes = [8, 1], strides = [1, 1]} : vector<32x1xf32> to vector<8x1xf32>
    %cst_60 = arith.constant 0.000000e+00 : f32
    %172 = vector.broadcast %cst_60 : f32 to vector<8x1xf32>
    %173 = arith.cmpf oeq, %170, %172 : vector<8x1xf32>
    %cst_61 = arith.constant 0.000000e+00 : f32
    %174 = vector.broadcast %cst_61 : f32 to vector<8x1xf32>
    %175 = arith.cmpf oeq, %158, %174 : vector<8x1xf32>
    %176 = arith.select %175, %79, %84 : vector<8x1xi1>, vector<8x1xf32>
    %cst_62 = arith.constant 0.000000e+00 : f32
    %177 = vector.broadcast %cst_62 : f32 to vector<8x1xf32>
    %178 = arith.cmpf oeq, %158, %177 : vector<8x1xf32>
    %179 = arith.select %178, %89, %94 : vector<8x1xi1>, vector<8x1xf32>
    %180 = arith.select %173, %176, %179 : vector<8x1xi1>, vector<8x1xf32>
    %cst_63 = arith.constant 0.000000e+00 : f32
    %181 = vector.broadcast %cst_63 : f32 to vector<8x1xf32>
    %182 = arith.cmpf oeq, %170, %181 : vector<8x1xf32>
    %cst_64 = arith.constant 0.000000e+00 : f32
    %183 = vector.broadcast %cst_64 : f32 to vector<8x1xf32>
    %184 = arith.cmpf oeq, %180, %183 : vector<8x1xf32>
    %185 = arith.select %184, %50, %58 : vector<8x1xi1>, vector<8x1xf32>
    %cst_65 = arith.constant 0.000000e+00 : f32
    %186 = vector.broadcast %cst_65 : f32 to vector<8x1xf32>
    %187 = arith.cmpf oeq, %180, %186 : vector<8x1xf32>
    %188 = arith.select %187, %66, %74 : vector<8x1xi1>, vector<8x1xf32>
    %189 = arith.select %182, %185, %188 : vector<8x1xi1>, vector<8x1xf32>
    %190 = arith.minimumf %189, %171 : vector<8x1xf32>
    %191 = arith.minimumf %169, %190 : vector<8x1xf32>
    %192 = vector.extract_strided_slice %117 {offsets = [24, 0], sizes = [8, 1], strides = [1, 1]} : vector<32x1xf32> to vector<8x1xf32>
    %193 = vector.extract_strided_slice %125 {offsets = [24, 0], sizes = [8, 1], strides = [1, 1]} : vector<32x1xf32> to vector<8x1xf32>
    %cst_66 = arith.constant 0.000000e+00 : f32
    %194 = vector.broadcast %cst_66 : f32 to vector<8x1xf32>
    %195 = arith.cmpf oeq, %192, %194 : vector<8x1xf32>
    %cst_67 = arith.constant 0.000000e+00 : f32
    %196 = vector.broadcast %cst_67 : f32 to vector<8x1xf32>
    %197 = arith.cmpf oeq, %180, %196 : vector<8x1xf32>
    %198 = arith.select %197, %79, %84 : vector<8x1xi1>, vector<8x1xf32>
    %cst_68 = arith.constant 0.000000e+00 : f32
    %199 = vector.broadcast %cst_68 : f32 to vector<8x1xf32>
    %200 = arith.cmpf oeq, %180, %199 : vector<8x1xf32>
    %201 = arith.select %200, %89, %94 : vector<8x1xi1>, vector<8x1xf32>
    %202 = arith.select %195, %198, %201 : vector<8x1xi1>, vector<8x1xf32>
    %cst_69 = arith.constant 0.000000e+00 : f32
    %203 = vector.broadcast %cst_69 : f32 to vector<8x1xf32>
    %204 = arith.cmpf oeq, %192, %203 : vector<8x1xf32>
    %cst_70 = arith.constant 0.000000e+00 : f32
    %205 = vector.broadcast %cst_70 : f32 to vector<8x1xf32>
    %206 = arith.cmpf oeq, %202, %205 : vector<8x1xf32>
    %207 = arith.select %206, %50, %58 : vector<8x1xi1>, vector<8x1xf32>
    %cst_71 = arith.constant 0.000000e+00 : f32
    %208 = vector.broadcast %cst_71 : f32 to vector<8x1xf32>
    %209 = arith.cmpf oeq, %202, %208 : vector<8x1xf32>
    %210 = arith.select %209, %66, %74 : vector<8x1xi1>, vector<8x1xf32>
    %211 = arith.select %204, %207, %210 : vector<8x1xi1>, vector<8x1xf32>
    %212 = arith.minimumf %211, %193 : vector<8x1xf32>
    %213 = arith.minimumf %191, %212 : vector<8x1xf32>
    %c0_72 = arith.constant 0 : index
    %c0_73 = arith.constant 0 : index
    %214 = vector.load %arg5[%c0_72, %c0_73] : memref<8x2xf32, #tpu.memory_space<vmem>>, vector<8x1xf32>
    tpu.vector_store %arg5[%c0_72, %c0_73], %213 {strides = array<i32>} : memref<8x2xf32, #tpu.memory_space<vmem>>, vector<8x1xf32>,
    %c0_74 = arith.constant 0 : index
    %c1_75 = arith.constant 1 : index
    %215 = vector.load %arg5[%c0_74, %c1_75] : memref<8x2xf32, #tpu.memory_space<vmem>>, vector<8x1xf32>
    tpu.vector_store %arg5[%c0_74, %c1_75], %202 {strides = array<i32>} : memref<8x2xf32, #tpu.memory_space<vmem>>, vector<8x1xf32>,
    return
  }
}

</mosaic_0001>

<llo_original>
// kernel: visual_parity_forward.1
$region0: #{visual_parity_forward.1}
  #allocation0 [shape = 'u32[]', space=smem, size = 0x4, offset = 0x4, fixed_abs, tag = 'smem constant byte address 0x4 - core index']
  #allocation1 [shape = 'u32[144,128]{1,0:T(1,128)}', space=vmem, size = 0x12000, scoped, tag = 'internal scratch']
  %s0 = inlined_call_operand.vmem [shape: f32[12], index: 0, kind: input, shape index: {}]
  %s1 = inlined_call_operand.vmem [shape: bf16[32,256], index: 1, kind: input, shape index: {}]
  %s2 = inlined_call_operand.vmem [shape: f32[256,32], index: 2, kind: input, shape index: {}]
  %s3 = inlined_call_operand.vmem [shape: f32[1,32], index: 3, kind: input, shape index: {}]
  %s4 = inlined_call_operand.vmem [shape: f32[2,32], index: 4, kind: input, shape index: {}]
  %s5 = inlined_call_operand.vmem [shape: f32[8,2], index: 5, kind: output, shape index: {}]
  %s6 = sld [smem:[#allocation0]]
  $region34: #{visual_parity_forward.1} parent=0
    _
  %s8 = ssub.s32 1, %s6
  %s9 = scalar_select 0, %s8, %s6
  $region1: #{visual_parity_forward.1} parent=0
    #allocation2 [shape = 'u8[512]{0}', space=smem, size = 0x200, scoped, tag = 'input window, operand 0, single buffered']
    #allocation3 [shape = 's32[1]{0}', space=sflag, size = 0x4, scoped, tag = 'scoped memory for visual_parity_forward.1']
    %10 = vsyncpa [#allocation3], 0
    // Predicated region
    $region2: #{visual_parity_forward.1} parent=1 // pred_check
      _
    $region3: #{visual_parity_forward.1} parent=1 // pred_check_branch
      %12 = sbr.rel (0) target = $region5
    $region4: #{visual_parity_forward.1} parent=1 // pred_region
      %s14 = ssub.s32 16, 16
      %15 = vsyncadd [#allocation3], %s14
      %s17 = sshll.u32 %s0, 4
      %s18 = int_to_ptr.vmem [resolvable:$true] %s17
      %20 = dma.vmem_to_smem %s18, 16, [#allocation2], [#allocation3]
    $region5: #{visual_parity_forward.1} parent=1 // pred_fallthru
      _
    // Predicated region
    $region6: #{visual_parity_forward.1} parent=1 // pred_check
      _
    $region7: #{visual_parity_forward.1} parent=1 // pred_check_branch
      %22 = sbr.rel (0) target = $region9
    $region8: #{visual_parity_forward.1} parent=1 // pred_region
      _
    $region9: #{visual_parity_forward.1} parent=1 // pred_fallthru
      _
    // Predicated region
    $region10: #{visual_parity_forward.1} parent=1 // pred_check
      _
    $region11: #{visual_parity_forward.1} parent=1 // pred_check_branch
      %24 = sbr.rel (0) target = $region13
    $region12: #{visual_parity_forward.1} parent=1 // pred_region
      _
    $region13: #{visual_parity_forward.1} parent=1 // pred_fallthru
      _
    // Predicated region
    $region14: #{visual_parity_forward.1} parent=1 // pred_check
      _
    $region15: #{visual_parity_forward.1} parent=1 // pred_check_branch
      %26 = sbr.rel (0) target = $region17
    $region16: #{visual_parity_forward.1} parent=1 // pred_region
      _
    $region17: #{visual_parity_forward.1} parent=1 // pred_fallthru
      _
    // Predicated region
    $region18: #{visual_parity_forward.1} parent=1 // pred_check
      _
    $region19: #{visual_parity_forward.1} parent=1 // pred_check_branch
      %28 = sbr.rel (0) target = $region21
    $region20: #{visual_parity_forward.1} parent=1 // pred_region
      _
    $region21: #{visual_parity_forward.1} parent=1 // pred_fallthru
      _
    // Predicated region
    $region22: #{visual_parity_forward.1} parent=1 // pred_check
      _
    $region23: #{visual_parity_forward.1} parent=1 // pred_check_branch
      %30 = sbr.rel (0) target = $region25
    $region24: #{visual_parity_forward.1} parent=1 // pred_region
      %31 = dma.done [#allocation3], 16
    $region25: #{visual_parity_forward.1} parent=1 // pred_fallthru
      _
    %32 = sfence
    %s33 = sld [smem:[#allocation2 + $0x1]]
    %v34 = vstv %s33
    %s35 = sld [smem:[#allocation2]]
    %v36 = vstv %s35
    %v37 = vsub.f32 %v34, %v36
    %s38 = sld [smem:[#allocation2 + $0x3]]
    %v39 = vstv %s38
    %s40 = sld [smem:[#allocation2 + $0x2]]
    %v41 = vstv %s40
    %v42 = vsub.f32 %v39, %v41
    %s43 = sld [smem:[#allocation2 + $0x5]]
    %v44 = vstv %s43
    %s45 = sld [smem:[#allocation2 + $0x4]]
    %v46 = vstv %s45
    %v47 = vsub.f32 %v44, %v46
    %s48 = sld [smem:[#allocation2 + $0x7]]
    %v49 = vstv %s48
    %s50 = sld [smem:[#allocation2 + $0x6]]
    %v51 = vstv %s50
    %v52 = vsub.f32 %v49, %v51
    %s53 = sld [smem:[#allocation2 + $0x9]]
    %v54 = vstv %s53
    %s55 = sld [smem:[#allocation2 + $0x8]]
    %v56 = vstv %s55
    %v57 = vsub.f32 %v54, %v56
    %s58 = sld [smem:[#allocation2 + $0xb]]
    %v59 = vstv %s58
    %s60 = sld [smem:[#allocation2 + $0xa]]
    %v61 = vstv %s60
    %v62 = vsub.f32 %v59, %v61
    %v63 = vand.u32 2147483647, %v37
    %v64 = vsub.f32 0.0, %v63
    %v65 = vmul.f32 %v64, 1.442695
    %v66 = vpow.pop %v65
    %v67 = vadd.f32 %v66, 1.0
    %v68 = vrcp.pop %v67
    %v69 = vmul.f32 1.0, %v68
    %vm70 = vcmp.gt.f32.partialorder %v37, 0.0
    %v71 = vsel %vm70, 1.0, 0.0
    %v72 = vand.u32 2147483647, %v42
    %v73 = vsub.f32 0.0, %v72
    %v74 = vmul.f32 %v73, 1.442695
    %v75 = vpow.pop %v74
    %v76 = vadd.f32 %v75, 1.0
    %v77 = vrcp.pop %v76
    %v78 = vmul.f32 1.0, %v77
    %v79 = vand.u32 2147483647, %v47
    %v80 = vsub.f32 0.0, %v79
    %v81 = vmul.f32 %v80, 1.442695
    %v82 = vpow.pop %v81
    %v83 = vadd.f32 %v82, 1.0
    %v84 = vrcp.pop %v83
    %v85 = vmul.f32 1.0, %v84
    %v86 = vand.u32 2147483647, %v52
    %v87 = vsub.f32 0.0, %v86
    %v88 = vmul.f32 %v87, 1.442695
    %v89 = vpow.pop %v88
    %v90 = vadd.f32 %v89, 1.0
    %v91 = vrcp.pop %v90
    %v92 = vmul.f32 1.0, %v91
    %v93 = vand.u32 2147483647, %v57
    %v94 = vsub.f32 0.0, %v93
    %v95 = vmul.f32 %v94, 1.442695
    %v96 = vpow.pop %v95
    %v97 = vadd.f32 %v96, 1.0
    %v98 = vrcp.pop %v97
    %v99 = vmul.f32 1.0, %v98
    %vm100 = vcmp.gt.f32.partialorder %v42, 0.0
    %v101 = vsel %vm100, 1.0, 0.0
    %vm102 = vcmp.gt.f32.partialorder %v47, 0.0
    %v103 = vsel %vm102, 1.0, 0.0
    %vm104 = vcmp.gt.f32.partialorder %v52, 0.0
    %v105 = vsel %vm104, 1.0, 0.0
    %vm106 = vcmp.gt.f32.partialorder %v57, 0.0
    %v107 = vsel %vm106, 1.0, 0.0
    %v108 = vld [vmem:[%s1] sm:$0xff]
    %v109 = vld [vmem:[%s1 + $0x8] sm:$0xff]
    %v110 = vld [vmem:[%s1 + $0x10] sm:$0xff]
    %v111 = vld [vmem:[%s1 + $0x18] sm:$0xff]
    %v112 = vunpack.c.l.bf16 %v108
    %v113 = vunpack.c.h.bf16 %v108
    %v114 = vunpack.c.l.bf16 %v109
    %v115 = vunpack.c.h.bf16 %v109
    %v116 = vunpack.c.l.bf16 %v110
    %v117 = vunpack.c.h.bf16 %v110
    %v118 = vunpack.c.l.bf16 %v111
    %v119 = vunpack.c.h.bf16 %v111
    %v120 = vld [vmem:[%s2] sm:$0xff]
    %v121 = vld [vmem:[%s2 + $0x8] sm:$0xff]
    %v122 = vld [vmem:[%s2 + $0x10] sm:$0xff]
    %v123 = vld [vmem:[%s2 + $0x18] sm:$0xff]
    %v124 = vld [vmem:[%s2 + $0x20] sm:$0xff]
    %v125 = vld [vmem:[%s2 + $0x28] sm:$0xff]
    %v126 = vld [vmem:[%s2 + $0x30] sm:$0xff]
    %v127 = vld [vmem:[%s2 + $0x38] sm:$0xff]
    %v128 = vld [vmem:[%s2 + $0x40] sm:$0xff]
    %v129 = vld [vmem:[%s2 + $0x48] sm:$0xff]
    %v130 = vld [vmem:[%s2 + $0x50] sm:$0xff]
    %v131 = vld [vmem:[%s2 + $0x58] sm:$0xff]
    %v132 = vld [vmem:[%s2 + $0x60] sm:$0xff]
    %v133 = vld [vmem:[%s2 + $0x68] sm:$0xff]
    %v134 = vld [vmem:[%s2 + $0x70] sm:$0xff]
    %v135 = vld [vmem:[%s2 + $0x78] sm:$0xff]
    %v136 = vld [vmem:[%s2 + $0x80] sm:$0xff]
    %v137 = vld [vmem:[%s2 + $0x88] sm:$0xff]
    %v138 = vld [vmem:[%s2 + $0x90] sm:$0xff]
    %v139 = vld [vmem:[%s2 + $0x98] sm:$0xff]
    %v140 = vld [vmem:[%s2 + $0xa0] sm:$0xff]
    %v141 = vld [vmem:[%s2 + $0xa8] sm:$0xff]
    %v142 = vld [vmem:[%s2 + $0xb0] sm:$0xff]
    %v143 = vld [vmem:[%s2 + $0xb8] sm:$0xff]
    %v144 = vld [vmem:[%s2 + $0xc0] sm:$0xff]
    %v145 = vld [vmem:[%s2 + $0xc8] sm:$0xff]
    %v146 = vld [vmem:[%s2 + $0xd0] sm:$0xff]
    %v147 = vld [vmem:[%s2 + $0xd8] sm:$0xff]
    %v148 = vld [vmem:[%s2 + $0xe0] sm:$0xff]
    %v149 = vld [vmem:[%s2 + $0xe8] sm:$0xff]
    %v150 = vld [vmem:[%s2 + $0xf0] sm:$0xff]
    %v151 = vld [vmem:[%s2 + $0xf8] sm:$0xff]
    %v152 = vld [vmem:[%s3] sm:$0x1]
    %v154 = vlaneseq
    %v155 = vshrl.u32 %v154, 7
    %v156 = vsub.s32 0, %v155
    %v157 = vrot.slane %v152, %v156
    %159 = vmatprep.subr.mxu0 0.0
    %160 = vmatpush1.msra.mxu0 %v120
    %161 = vmatprep.subr.mxu0 0.0
    %162 = vmatpush1.msra.mxu0 %v121
    %163 = vmatprep.subr.mxu0 0.0
    %164 = vmatpush1.msra.mxu0 %v122
    %165 = vmatprep.subr.mxu0 0.0
    %166 = vmatpush1.msra.mxu0 %v123
    %167 = vmatprep.subr.mxu0 0.0
    %168 = vmatpush1.msra.mxu0 %v124
    %169 = vmatprep.subr.mxu0 0.0
    %170 = vmatpush1.msra.mxu0 %v125
    %171 = vmatprep.subr.mxu0 0.0
    %172 = vmatpush1.msra.mxu0 %v126
    %173 = vmatprep.subr.mxu0 0.0
    %174 = vmatpush1.msra.mxu0 %v127
    %175 = vmatprep.subr.mxu0 0.0
    %176 = vmatpush1.msra.mxu0 %v128
    %177 = vmatprep.subr.mxu0 0.0
    %178 = vmatpush1.msra.mxu0 %v129
    %179 = vmatprep.subr.mxu0 0.0
    %180 = vmatpush1.msra.mxu0 %v130
    %181 = vmatprep.subr.mxu0 0.0
    %182 = vmatpush1.msra.mxu0 %v131
    %183 = vmatprep.subr.mxu0 0.0
    %184 = vmatpush1.msra.mxu0 %v132
    %185 = vmatprep.subr.mxu0 0.0
    %186 = vmatpush1.msra.mxu0 %v133
    %187 = vmatprep.subr.mxu0 0.0
    %188 = vmatpush1.msra.mxu0 %v134
    %189 = vmatprep.subr.mxu0 0.0
    %190 = vmatpush1.msra.mxu0 %v135
    %191 = vmatprep.subr.mxu0 0.0
    %192 = vmatpush1.msra.mxu0 %v136
    %193 = vmatprep.subr.mxu0 0.0
    %194 = vmatpush1.msra.mxu0 %v137
    %195 = vmatprep.subr.mxu0 0.0
    %196 = vmatpush1.msra.mxu0 %v138
    %197 = vmatprep.subr.mxu0 0.0
    %198 = vmatpush1.msra.mxu0 %v139
    %199 = vmatprep.subr.mxu0 0.0
    %200 = vmatpush1.msra.mxu0 %v140
    %201 = vmatprep.subr.mxu0 0.0
    %202 = vmatpush1.msra.mxu0 %v141
    %203 = vmatprep.subr.mxu0 0.0
    %204 = vmatpush1.msra.mxu0 %v142
    %205 = vmatprep.subr.mxu0 0.0
    %206 = vmatpush1.msra.mxu0 %v143
    %207 = vmatprep.subr.mxu0 0.0
    %208 = vmatpush1.msra.mxu0 %v144
    %209 = vmatprep.subr.mxu0 0.0
    %210 = vmatpush1.msra.mxu0 %v145
    %211 = vmatprep.subr.mxu0 0.0
    %212 = vmatpush1.msra.mxu0 %v146
    %213 = vmatprep.subr.mxu0 0.0
    %214 = vmatpush1.msra.mxu0 %v147
    %215 = vmatprep.subr.mxu0 0.0
    %216 = vmatpush1.msra.mxu0 %v148
    %217 = vmatprep.subr.mxu0 0.0
    %218 = vmatpush1.msra.mxu0 %v149
    %219 = vmatprep.subr.mxu0 0.0
    %220 = vmatpush1.msra.mxu0 %v150
    %221 = vmatprep.subr.mxu0 0.0
    %222 = vmatpush1.msra.mxu0 %v151
    %223 = vmatprep.mubr.f32.mxu0 %v113
    %224 = vmatmul.mubr.f32.gmra.mrb[0].mxu0 %v112
    %v225 = vpop.f32.mrb[0].mxu0
    %v226 = vadd.f32 %v157, %v225
    %v227 = vpop.f32.mrb[0].mxu0
    %228 = vmatprep.mubr.f32.mxu0 %v115
    %229 = vmatmul.mubr.f32.gmra.mrb[0].mxu0 %v114
    %v230 = vpop.f32.mrb[0].mxu0
    %v231 = vadd.f32 %v157, %v230
    %v232 = vpop.f32.mrb[0].mxu0
    %233 = vmatprep.mubr.f32.mxu0 %v117
    %234 = vmatmul.mubr.f32.gmra.mrb[0].mxu0 %v116
    %v235 = vpop.f32.mrb[0].mxu0
    %v236 = vadd.f32 %v157, %v235
    %v237 = vpop.f32.mrb[0].mxu0
    %238 = vmatprep.mubr.f32.mxu0 %v119
    %239 = vmatmul.mubr.f32.gmra.mrb[0].mxu0 %v118
    %v240 = vpop.f32.mrb[0].mxu0
    %v241 = vadd.f32 %v157, %v240
    %v242 = vpop.f32.mrb[0].mxu0
    %243 = vdwg.mxu0
    %v244 = vmax.f32 %v226, 0.0
    %v245 = vmax.f32 %v231, 0.0
    %v246 = vmax.f32 %v236, 0.0
    %v247 = vmax.f32 %v241, 0.0
    %v248 = vld [vmem:[%s4 + $0x1] sm:$0x1]
    %v249 = vld [vmem:[%s4] sm:$0x1]
    %v250 = vsub.f32 %v248, %v249
    %v251 = vlaneseq
    %v252 = vshrl.u32 %v251, 7
    %v253 = vsub.s32 0, %v252
    %v254 = vrot.slane %v250, %v253
    %v255 = vmul.f32 %v244, %v254
    %v256 = vmul.f32 %v245, %v254
    %v257 = vmul.f32 %v246, %v254
    %v258 = vmul.f32 %v247, %v254
    %vm259 = vcmask 261120
    %v260 = vsel %vm259, %v255, 0.0
    %261 = vadd.xlane.f32.xlu0 %v260
    %v262 = vpop.xlane.xlu0 %261
    %v263 = vsel %vm259, %v256, 0.0
    %264 = vadd.xlane.f32.xlu0 %v263
    %v265 = vpop.xlane.xlu0 %264
    %v266 = vsel %vm259, %v257, 0.0
    %267 = vadd.xlane.f32.xlu0 %v266
    %v268 = vpop.xlane.xlu0 %267
    %v269 = vsel %vm259, %v258, 0.0
    %270 = vadd.xlane.f32.xlu0 %v269
    %v271 = vpop.xlane.xlu0 %270
    %v272 = vadd.f32 %v262, %v62
    %v273 = vadd.f32 %v265, %v62
    %v274 = vadd.f32 %v268, %v62
    %v275 = vadd.f32 %v271, %v62
    %vm276 = vcmp.gt.f32.partialorder %v272, 0.0
    %vm277 = vcmp.gt.f32.partialorder %v273, 0.0
    %vm278 = vcmp.gt.f32.partialorder %v274, 0.0
    %vm279 = vcmp.gt.f32.partialorder %v275, 0.0
    %v280 = vsel %vm276, 1.0, 0.0
    %v281 = vsel %vm277, 1.0, 0.0
    %v282 = vsel %vm278, 1.0, 0.0
    %v283 = vsel %vm279, 1.0, 0.0
    %v284 = vand.u32 2147483647, %v272
    %v285 = vand.u32 2147483647, %v273
    %v286 = vand.u32 2147483647, %v274
    %v287 = vand.u32 2147483647, %v275
    %v288 = vsub.f32 0.0, %v284
    %v289 = vsub.f32 0.0, %v285
    %v290 = vsub.f32 0.0, %v286
    %v291 = vsub.f32 0.0, %v287
    %v292 = vmul.f32 %v288, 1.442695
    %v293 = vpow.pop %v292
    %v294 = vmul.f32 %v289, 1.442695
    %v295 = vpow.pop %v294
    %v296 = vmul.f32 %v290, 1.442695
    %v297 = vpow.pop %v296
    %v298 = vmul.f32 %v291, 1.442695
    %v299 = vpow.pop %v298
    %v300 = vadd.f32 %v293, 1.0
    %v301 = vadd.f32 %v295, 1.0
    %v302 = vadd.f32 %v297, 1.0
    %v303 = vadd.f32 %v299, 1.0
    %v304 = vrcp.pop %v300
    %v305 = vmul.f32 1.0, %v304
    %v306 = vrcp.pop %v301
    %v307 = vmul.f32 1.0, %v306
    %v308 = vrcp.pop %v302
    %v309 = vmul.f32 1.0, %v308
    %v310 = vrcp.pop %v303
    %v311 = vmul.f32 1.0, %v310
    %vm312 = vcmp.eq.f32.partialorder %v280, 0.0
    %vm313 = vcmp.eq.f32.partialorder %v71, 0.0
    %v314 = vsel %vm313, %v101, %v103
    %v315 = vsel %vm313, %v105, %v107
    %v316 = vsel %vm312, %v314, %v315
    %vm317 = vcmp.eq.f32.partialorder %v316, 0.0
    %v318 = vsel %vm317, %v78, %v85
    %v319 = vsel %vm317, %v92, %v99
    %v320 = vsel %vm312, %v318, %v319
    %v321 = vmin.f32 %v320, %v305
    %v322 = vmin.f32 %v69, %v321
    %vm323 = vcmp.eq.f32.partialorder %v281, 0.0
    %v324 = vsel %vm317, %v101, %v103
    %v325 = vsel %vm317, %v105, %v107
    %v326 = vsel %vm323, %v324, %v325
    %vm327 = vcmp.eq.f32.partialorder %v326, 0.0
    %v328 = vsel %vm327, %v78, %v85
    %v329 = vsel %vm327, %v92, %v99
    %v330 = vsel %vm323, %v328, %v329
    %v331 = vmin.f32 %v330, %v307
    %v332 = vmin.f32 %v322, %v331
    %vm333 = vcmp.eq.f32.partialorder %v282, 0.0
    %v334 = vsel %vm327, %v101, %v103
    %v335 = vsel %vm327, %v105, %v107
    %v336 = vsel %vm333, %v334, %v335
    %vm337 = vcmp.eq.f32.partialorder %v336, 0.0
    %v338 = vsel %vm337, %v78, %v85
    %v339 = vsel %vm337, %v92, %v99
    %v340 = vsel %vm333, %v338, %v339
    %v341 = vmin.f32 %v340, %v309
    %v342 = vmin.f32 %v332, %v341
    %vm343 = vcmp.eq.f32.partialorder %v283, 0.0
    %v344 = vsel %vm337, %v101, %v103
    %v345 = vsel %vm337, %v105, %v107
    %v346 = vsel %vm343, %v344, %v345
    %vm347 = vcmp.eq.f32.partialorder %v346, 0.0
    %v348 = vsel %vm347, %v78, %v85
    %v349 = vsel %vm347, %v92, %v99
    %v350 = vsel %vm343, %v348, %v349
    %v351 = vmin.f32 %v350, %v311
    %v352 = vmin.f32 %v342, %v351
    %vm353 = vcmask 7168
    %354 = vst.msk [vmem:[%s5] sm:$0xff] %vm353, %v352
    %vm355 = vcmask 15368
    %356 = vst.msk [vmem:[%s5] sm:$0xff] %vm355, %v346
    // Predicated region
    $region26: #{visual_parity_forward.1} parent=1 // pred_check
      _
    $region27: #{visual_parity_forward.1} parent=1 // pred_check_branch
      %358 = sbr.rel (0) target = $region29
    $region28: #{visual_parity_forward.1} parent=1 // pred_region
      _
    $region29: #{visual_parity_forward.1} parent=1 // pred_fallthru
      _
    // Predicated region
    $region30: #{visual_parity_forward.1} parent=1 // pred_check
      _
    $region31: #{visual_parity_forward.1} parent=1 // pred_check_branch
      %360 = sbr.rel (0) target = $region33
    $region32: #{visual_parity_forward.1} parent=1 // pred_region
      _
    $region33: #{visual_parity_forward.1} parent=1 // pred_fallthru
      _
    %361 = vsyncpa [#allocation3], 1

</llo_original>
